<compile_context>
chip_gen: v7x
topology: tpu7x:2x2x1
jax: 0.10.0
libtpu: 0.0.40
codegen_flags: <defaults>
</compile_context>

<pallas_src>
import jax
import jax.numpy as jnp
from jax.experimental import pallas as pl
from jax.experimental.pallas import tpu as pltpu

EPS = 1e-5          # nn.BatchNorm2d default
LANE = 128          # lane width (matmul output padding target)
VMEM_LIMIT = 32 * 1024 * 1024


def _round_up(x, m):
    return ((x + m - 1) // m) * m


def _conv_stats_kernel(p_ref, w_ref, sum_ref, sq_ref):
    """Pass 1: one MXU matmul per tile + per-batch BN-stat partial sums.

    p_ref:   (1, TM, 9*Cin)  bf16 im2col patches
    w_ref:   (9*Cin, Cpad)   bf16 folded conv weight (resident)
    sum_ref: (1, 8, Cpad)    f32 resident per-batch partial sums
    sq_ref:  (1, 8, Cpad)    f32 resident per-batch partial sums of squares
    """
    @pl.when(pl.program_id(1) == 0)
    def _():
        sum_ref[...] = jnp.zeros_like(sum_ref)
        sq_ref[...] = jnp.zeros_like(sq_ref)

    y = jnp.dot(p_ref[0], w_ref[...], preferred_element_type=jnp.float32)
    # Fold rows into (8, Cpad) groups so accumulator stores stay full-tile.
    yr = y.reshape(y.shape[0] // 8, 8, y.shape[1])
    sum_ref[...] += yr.sum(axis=0).reshape(sum_ref.shape)
    sq_ref[...] += (yr * yr).sum(axis=0).reshape(sq_ref.shape)


def _conv_bn_relu_kernel(p_ref, w_ref, scale_ref, shift_ref, o_ref):
    """Pass 2: recompute conv (same bf16 matmul as pass 1) + BN + ReLU, and
    write the tile channel-major (fused output transpose, XLU slot is idle).

    p_ref:   (1, TM, 9*Cin)  bf16
    w_ref:   (9*Cin, Cpad)   bf16
    scale_ref/shift_ref: (1, Cpad) f32
    o_ref:   (1, Cout8, TM)
    """
    y = jnp.dot(p_ref[0], w_ref[...], preferred_element_type=jnp.float32)
    y = jnp.maximum(y * scale_ref[...] + shift_ref[...], 0.0)
    c8 = o_ref.shape[1]
    yt = jnp.transpose(y)[:c8, :]                     # (Cout8, TM)
    o_ref[...] = yt.reshape(o_ref.shape).astype(o_ref.dtype)


def single_conv(x_nchw, weight_oihw, bias, gamma, beta):
    """x_nchw: (N, Cin, H, W); weight_oihw: (Cout, Cin, 3, 3). Returns NCHW."""
    N, Cin, H, W = x_nchw.shape
    Cout = weight_oihw.shape[0]
    del bias  # exactly cancelled by train-mode BatchNorm mean subtraction

    K = 9 * Cin
    Cpad = _round_up(Cout, LANE)   # matmul lane dim (weight columns)
    Cout8 = _round_up(Cout, 8)     # stored output channel dim (sublane-aligned)
    HW = H * W
    TM = 512 if HW >= 512 else _round_up(HW, LANE)
    HWpad = _round_up(HW, TM)

    # ---- wrapper-side im2col (bf16): NCHW -> (N, HWpad, 9*Cin) -------------
    # TODO(synk): keep NHWC upstream and build patches in-kernel from halo'd
    # row tiles to remove this 9x-inflated HBM pass entirely.
    x_nhwc = jnp.transpose(x_nchw, (0, 2, 3, 1)).astype(jnp.bfloat16)
    xp = jnp.pad(x_nhwc, ((0, 0), (1, 1), (1, 1), (0, 0)))
    patches = jnp.concatenate(
        [xp[:, dy:dy + H, dx:dx + W, :] for dy in range(3) for dx in range(3)],
        axis=-1).reshape(N, HW, K)
    if HWpad != HW:
        # Zero rows -> zero conv rows (no in-kernel bias) -> BN stats unaffected.
        patches = jnp.pad(patches, ((0, 0), (0, HWpad - HW), (0, 0)))

    # (Cout, Cin, 3, 3) -> (kh, kw, Cin, Cout) -> (9*Cin, Cout) -> pad -> bf16.
    w = jnp.transpose(weight_oihw, (2, 3, 1, 0)).reshape(K, Cout)
    w = jnp.pad(w.astype(jnp.float32), ((0, 0), (0, Cpad - Cout)))
    w = w.astype(jnp.bfloat16)

    grid = (N, HWpad // TM)

    # ---- pass 1: conv matmul + per-batch global-BN partial statistics ------
    psum, psq = pl.pallas_call(
        _conv_stats_kernel,
        out_shape=(
            jax.ShapeDtypeStruct((N, 8, Cpad), jnp.float32),
            jax.ShapeDtypeStruct((N, 8, Cpad), jnp.float32),
        ),
        grid=grid,
        in_specs=[
            pl.BlockSpec((1, TM, K), lambda n, j: (n, j, 0)),
            pl.BlockSpec((K, Cpad), lambda n, j: (0, 0)),
        ],
        out_specs=(
            pl.BlockSpec((1, 8, Cpad), lambda n, j: (n, 0, 0)),
            pl.BlockSpec((1, 8, Cpad), lambda n, j: (n, 0, 0)),
        ),
        compiler_params=pltpu.CompilerParams(
            dimension_semantics=("parallel", "arbitrary"),  # stats accumulate over j only
            vmem_limit_bytes=VMEM_LIMIT),
    )(patches, w)

    # ---- tiny per-channel finalize (128-wide vectors; negligible) ----------
    count = jnp.float32(N * HW)                 # actual pixel count, not padded
    s = psum.sum(axis=(0, 1))
    ss = psq.sum(axis=(0, 1))
    mean = s / count
    var = jnp.maximum(ss / count - mean * mean, 0.0)
    inv = jax.lax.rsqrt(var + EPS)
    gamma_p = jnp.pad(gamma.astype(jnp.float32), (0, Cpad - Cout))
    beta_p = jnp.pad(beta.astype(jnp.float32), (0, Cpad - Cout))
    scale = (gamma_p * inv).reshape(1, Cpad)
    shift = (beta_p - mean * gamma_p * inv).reshape(1, Cpad)

    # ---- pass 2: recompute conv + fused BN + ReLU + channel-major store ----
    out_p = pl.pallas_call(
        _conv_bn_relu_kernel,
        out_shape=jax.ShapeDtypeStruct((N, Cout8, HWpad), x_nchw.dtype),
        grid=grid,
        in_specs=[
            pl.BlockSpec((1, TM, K), lambda n, j: (n, j, 0)),
            pl.BlockSpec((K, Cpad), lambda n, j: (0, 0)),
            pl.BlockSpec((1, Cpad), lambda n, j: (0, 0)),
            pl.BlockSpec((1, Cpad), lambda n, j: (0, 0)),
        ],
        out_specs=pl.BlockSpec((1, Cout8, TM), lambda n, j: (n, 0, j)),
        compiler_params=pltpu.CompilerParams(
            dimension_semantics=("parallel", "parallel"),
            vmem_limit_bytes=VMEM_LIMIT),
    )(patches, w, scale, shift)

    # Only cheap slicing / metadata reshape remains (no full transpose pass).
    out = out_p[:, :Cout, :HW].reshape(N, Cout, H, W)
    return out


def _reference(x, weight, bias, gamma, beta):
    # Pure-JAX f32 reference of the same semantics (correctness check only).
    conv = jax.lax.conv_general_dilated(
        x, weight, window_strides=(1, 1), padding='SAME',
        dimension_numbers=('NCHW', 'OIHW', 'NCHW'))
    conv = conv + bias[None, :, None, None]
    mean = conv.mean(axis=(0, 2, 3), keepdims=True)
    var = ((conv - mean) ** 2).mean(axis=(0, 2, 3), keepdims=True)
    y = (conv - mean) / jnp.sqrt(var + EPS)
    y = y * gamma[None, :, None, None] + beta[None, :, None, None]
    return jnp.maximum(y, 0.0)


if __name__ == "__main__":
    N, Cin, Cout, H, W = 2, 4, 8, 16, 16

    key = jax.random.PRNGKey(0)
    kx, kw, kb = jax.random.split(key, 3)

    x = jax.random.normal(kx, (N, Cin, H, W), dtype=jnp.float32)

    # Deterministic Conv2d-style init (uniform bound = 1/sqrt(fan_in)).
    fan_in = Cin * 3 * 3
    bound = 1.0 / jnp.sqrt(jnp.float32(fan_in))
    weight = jax.random.uniform(kw, (Cout, Cin, 3, 3), jnp.float32, -bound, bound)
    bias = jax.random.uniform(kb, (Cout,), jnp.float32, -bound, bound)
    # BatchNorm2d default affine params.
    gamma = jnp.ones((Cout,), jnp.float32)
    beta = jnp.zeros((Cout,), jnp.float32)

    out = single_conv(x, weight, bias, gamma, beta)
    out = jax.block_until_ready(out)

    ref = _reference(x, weight, bias, gamma, beta)
    assert out.shape == (N, Cout, H, W)
    # bf16 MXU operands (f32 accumulation) -> relaxed tolerance vs f32 reference.
    max_err = float(jnp.max(jnp.abs(out - ref)))
    assert jnp.allclose(out, ref, atol=3e-2, rtol=3e-2), \
        f"mismatch vs reference (max abs err {max_err})"

    print("KERNEL_OK")
</pallas_src>

<mosaic_0001>
module attributes {stable_mosaic.version = 11 : i64} {
  func.func @_conv_stats_kernel(%arg0: i32, %arg1: i32, %arg2: memref<1x256x36xbf16, #tpu.memory_space<vmem>>, %arg3: memref<36x128xbf16, #tpu.memory_space<vmem>>, %arg4: memref<1x8x128xf32, #tpu.memory_space<vmem>>, %arg5: memref<1x8x128xf32, #tpu.memory_space<vmem>>) attributes {dimension_semantics = [#tpu.dimension_semantics<parallel>, #tpu.dimension_semantics<arbitrary>], iteration_bounds = array<i64: 2, 1>, scalar_prefetch = 0 : i64, scratch_operands = 0 : i64, tpu.core_type = #tpu.core_type<tc>, window_params = [{transform_indices = @transform_0, window_bounds = array<i64: 1, 256, 36>}, {pipeline_mode = #tpu.pipeline_mode<synchronous>, transform_indices = @transform_1, window_bounds = array<i64: 36, 128>}, {transform_indices = @transform_2, window_bounds = array<i64: 1, 8, 128>}, {transform_indices = @transform_3, window_bounds = array<i64: 1, 8, 128>}]} {
    %c0_i32 = arith.constant 0 : i32
    %0 = arith.cmpi eq, %arg1, %c0_i32 : i32
    %1 = arith.extui %0 : i1 to i32
    %c0_i32_0 = arith.constant 0 : i32
    %2 = arith.cmpi ne, %1, %c0_i32_0 : i32
    scf.if %2 {
      %cst_19 = arith.constant 0.000000e+00 : f32
      %19 = vector.broadcast %cst_19 : f32 to vector<1x8x128xf32>
      %c0_20 = arith.constant 0 : index
      %c0_21 = arith.constant 0 : index
      %c0_22 = arith.constant 0 : index
      %20 = vector.load %arg4[%c0_20, %c0_21, %c0_22] : memref<1x8x128xf32, #tpu.memory_space<vmem>>, vector<1x8x128xf32>
      tpu.vector_store %arg4[%c0_20, %c0_21, %c0_22], %19 {strides = array<i32>} : memref<1x8x128xf32, #tpu.memory_space<vmem>>, vector<1x8x128xf32>,
      %cst_23 = arith.constant 0.000000e+00 : f32
      %21 = vector.broadcast %cst_23 : f32 to vector<1x8x128xf32>
      %c0_24 = arith.constant 0 : index
      %c0_25 = arith.constant 0 : index
      %c0_26 = arith.constant 0 : index
      %22 = vector.load %arg5[%c0_24, %c0_25, %c0_26] : memref<1x8x128xf32, #tpu.memory_space<vmem>>, vector<1x8x128xf32>
      tpu.vector_store %arg5[%c0_24, %c0_25, %c0_26], %21 {strides = array<i32>} : memref<1x8x128xf32, #tpu.memory_space<vmem>>, vector<1x8x128xf32>,
    } else {
    }
    %c0 = arith.constant 0 : index
    %c0_1 = arith.constant 0 : index
    %c0_2 = arith.constant 0 : index
    %3 = vector.load %arg2[%c0, %c0_1, %c0_2] : memref<1x256x36xbf16, #tpu.memory_space<vmem>>, vector<1x256x36xbf16>
    %4 = vector.shape_cast %3 : vector<1x256x36xbf16> to vector<256x36xbf16>
    %c0_3 = arith.constant 0 : index
    %c0_4 = arith.constant 0 : index
    %5 = vector.load %arg3[%c0_3, %c0_4] : memref<36x128xbf16, #tpu.memory_space<vmem>>, vector<36x128xbf16>
    %cst = arith.constant dense<0.000000e+00> : vector<256x128xf32>
    %6 = tpu.matmul %4, %5, %cst {dimension_numbers = #tpu.dot_dimension_numbers<[1], [0], [0], [1], [0, 0, 1, 1], [], []>} : vector<256x36xbf16>, vector<36x128xbf16>, vector<256x128xf32> -> vector<256x128xf32>
    %7 = vector.shape_cast %6 : vector<256x128xf32> to vector<32x8x128xf32>
    %c0_5 = arith.constant 0 : index
    %c0_6 = arith.constant 0 : index
    %c0_7 = arith.constant 0 : index
    %8 = vector.load %arg4[%c0_5, %c0_6, %c0_7] : memref<1x8x128xf32, #tpu.memory_space<vmem>>, vector<1x8x128xf32>
    %cst_8 = arith.constant dense<0.000000e+00> : vector<8x128xf32>
    %9 = vector.multi_reduction <add>, %7, %cst_8 [0] : vector<32x8x128xf32> to vector<8x128xf32>
    %10 = vector.shape_cast %9 : vector<8x128xf32> to vector<1x8x128xf32>
    %11 = arith.addf %8, %10 : vector<1x8x128xf32>
    %c0_9 = arith.constant 0 : index
    %c0_10 = arith.constant 0 : index
    %c0_11 = arith.constant 0 : index
    %12 = vector.load %arg4[%c0_9, %c0_10, %c0_11] : memref<1x8x128xf32, #tpu.memory_space<vmem>>, vector<1x8x128xf32>
    tpu.vector_store %arg4[%c0_9, %c0_10, %c0_11], %11 {strides = array<i32>} : memref<1x8x128xf32, #tpu.memory_space<vmem>>, vector<1x8x128xf32>,
    %c0_12 = arith.constant 0 : index
    %c0_13 = arith.constant 0 : index
    %c0_14 = arith.constant 0 : index
    %13 = vector.load %arg5[%c0_12, %c0_13, %c0_14] : memref<1x8x128xf32, #tpu.memory_space<vmem>>, vector<1x8x128xf32>
    %14 = arith.mulf %7, %7 : vector<32x8x128xf32>
    %cst_15 = arith.constant dense<0.000000e+00> : vector<8x128xf32>
    %15 = vector.multi_reduction <add>, %14, %cst_15 [0] : vector<32x8x128xf32> to vector<8x128xf32>
    %16 = vector.shape_cast %15 : vector<8x128xf32> to vector<1x8x128xf32>
    %17 = arith.addf %13, %16 : vector<1x8x128xf32>
    %c0_16 = arith.constant 0 : index
    %c0_17 = arith.constant 0 : index
    %c0_18 = arith.constant 0 : index
    %18 = vector.load %arg5[%c0_16, %c0_17, %c0_18] : memref<1x8x128xf32, #tpu.memory_space<vmem>>, vector<1x8x128xf32>
    tpu.vector_store %arg5[%c0_16, %c0_17, %c0_18], %17 {strides = array<i32>} : memref<1x8x128xf32, #tpu.memory_space<vmem>>, vector<1x8x128xf32>,
    return
  }
  func.func @transform_0(%arg0: i32, %arg1: i32) -> (i32, i32, i32) {
    %c0_i32 = arith.constant 0 : i32
    %c0_i32_0 = arith.constant 0 : i32
    return %arg0, %arg1, %c0_i32 : i32, i32, i32
  }
  func.func @transform_1(%arg0: i32, %arg1: i32) -> (i32, i32) {
    %c0_i32 = arith.constant 0 : i32
    %c0_i32_0 = arith.constant 0 : i32
    %c0_i32_1 = arith.constant 0 : i32
    return %c0_i32, %c0_i32_0 : i32, i32
  }
  func.func @transform_2(%arg0: i32, %arg1: i32) -> (i32, i32, i32) {
    %c0_i32 = arith.constant 0 : i32
    %c0_i32_0 = arith.constant 0 : i32
    %c0_i32_1 = arith.constant 0 : i32
    return %arg0, %c0_i32, %c0_i32_0 : i32, i32, i32
  }
  func.func @transform_3(%arg0: i32, %arg1: i32) -> (i32, i32, i32) {
    %c0_i32 = arith.constant 0 : i32
    %c0_i32_0 = arith.constant 0 : i32
    %c0_i32_1 = arith.constant 0 : i32
    return %arg0, %c0_i32, %c0_i32_0 : i32, i32, i32
  }
}

</mosaic_0001>

<llo_original>
// kernel: tpu_custom_call.1
$region0: #{tpu_custom_call.1}
  #allocation0 [shape = 'u32[]', space=smem, size = 0x4, offset = 0x4, fixed_abs, tag = 'smem constant byte address 0x4 - core index']
  #allocation1 [shape = 'u32[144,128]{1,0:T(1,128)}', space=vmem, size = 0x12000, scoped, tag = 'internal scratch']
  %s0 = inlined_call_operand.vmem [shape: bf16[2,256,36], index: 0, kind: input, shape index: {}]
  %s1 = inlined_call_operand.vmem [shape: bf16[36,128], index: 1, kind: input, shape index: {}]
  %s2 = inlined_call_operand.hbm [shape: f32[2,8,128], index: 2, kind: output, shape index: {0}]
  %s3 = inlined_call_operand.hbm [shape: f32[2,8,128], index: 3, kind: output, shape index: {1}]
  %4 = xla_tuple %s2, %s3
  %s5 = sld [smem:[#allocation0]]
  $region53: #{tpu_custom_call.1} parent=0
    _
  %s7 = ssub.s32 1, %s5
  %s8 = scalar_select 0, %s7, %s5
  $region1: #{tpu_custom_call.1} parent=0
    #allocation2 [shape = 'u8[8192]{0}', space=vmem, size = 0x2000, scoped, tag = 'output window, operand 0']
    #allocation3 [shape = 's32[2]{0}', space=sflag, size = 0x8, scoped, tag = 'scoped memory for tpu_custom_call.1']
    #allocation4 [shape = 'u8[8192]{0}', space=vmem, size = 0x2000, scoped, tag = 'output window, operand 1']
    #allocation5 [shape = 's32[2]{0}', space=sflag, size = 0x8, scoped, tag = 'scoped memory for tpu_custom_call.1']
    %9 = vsyncpa [#allocation3], 0
    %s10 = scalar_lea.sflag [#allocation3], 1
    %11 = vsyncpa %s10, 0
    %12 = vsyncpa [#allocation5], 0
    %s13 = scalar_lea.sflag [#allocation5], 1
    %14 = vsyncpa %s13, 0
    loop: start=0, step=1, limit=4
    $region2: #{tpu_custom_call.1} parent=1 // loop_pre_header
      _
    $region3: #{tpu_custom_call.1} parent=1 // loop_header
      %s16 = sphi 0, %s20
      %p17 = scmp.ge.s32.totalorder %s16, 4
      %s23 = sphi 0, %s35
      %s24 = sphi 0, %s31
      %s25 = sphi 0, %s23
      %s26 = sphi 0, %s24
      %s27 = sphi 0, %s25
      %s28 = sphi 0, %s26
      %s40 = sphi 0, %s42
      %s43 = sphi 0, %s40
      %s44 = sphi 0, %s43
      %s60 = sphi 0, %s44
      %s64 = sphi 0, %s64
      %s66 = sphi 0, %s64
      %s67 = sphi 0, %s66
      %s81 = sphi 0, %s67
      %s87 = sphi 0, %s89
      %s90 = sphi 0, %s87
      %s91 = sphi 0, %s90
      %s107 = sphi 0, %s91
      %s113 = sphi 0, %s115
      %s116 = sphi 0, %s113
      %s117 = sphi 0, %s116
      %s133 = sphi 0, %s117
    $region4: #{tpu_custom_call.1} parent=1 // loop_header_branch
      %19 = sbr.rel (%p17) target = $region8
    $region5: #{tpu_custom_call.1} parent=1 // loop_body
      %s21 = ssub.s32 %s16, 1
      %s22 = ssub.s32 %s16, 2
      %s29 = sadd.s32 1, %s24
      %p30 = scmp.ge.s32.totalorder %s29, 1
      %s31 = scalar_select %p30, 0, %s29
      %s32 = sadd.s32 1, %s23
      %s33 = scalar_select %p30, %s32, %s23
      %p34 = scmp.ge.s32.totalorder %s33, 2
      %s35 = scalar_select %p34, 0, %s33
      %s36 = ssub.s32 %s23, %s35
      %s37 = ssub.s32 %s24, %s31
      %s38 = sor.u32 %s36, %s37
      %p39 = scmp.eq.s32.totalorder %s38, 0
      %s41 = sadd.s32 %s40, 1
      %s42 = scalar_select %p39, %s40, %s41
      %p45 = pneg %p39
      %p46 = scmp.eq.s32.totalorder %s16, 1
      %p47 = por %p45, %p46
      %p48 = scmp.ne.s32.totalorder %s40, %s43
      %p49 = scmp.eq.s32.totalorder %s16, 0
      %p50 = por %p48, %p49
      %p51 = scmp.ne.s32.totalorder %s40, %s43
      %p52 = scmp.eq.s32.totalorder %s21, 1
      %p53 = por %p51, %p52
      %p54 = scmp.ne.s32.totalorder %s43, %s44
      %p55 = scmp.eq.s32.totalorder %s21, 0
      %p56 = por %p54, %p55
      %p57 = scmp.ne.s32.totalorder %s43, %s44
      %p58 = scmp.eq.s32.totalorder %s22, 1
      %p59 = por %p57, %p58
      %p61 = scmp.ne.s32.totalorder %s44, %s60
      %p62 = scmp.eq.s32.totalorder %s22, 0
      %p63 = por %p61, %p62
      %s65 = sadd.s32 %s64, 1
      %p68 = scmp.eq.s32.totalorder %s16, 1
      %p69 = scmp.ne.s32.totalorder %s64, %s66
      %p70 = scmp.eq.s32.totalorder %s16, 0
      %p71 = por %p69, %p70
      %p72 = scmp.ne.s32.totalorder %s64, %s66
      %p73 = scmp.eq.s32.totalorder %s21, 1
      %p74 = por %p72, %p73
      %p75 = scmp.ne.s32.totalorder %s66, %s67
      %p76 = scmp.eq.s32.totalorder %s21, 0
      %p77 = por %p75, %p76
      %p78 = scmp.ne.s32.totalorder %s66, %s67
      %p79 = scmp.eq.s32.totalorder %s22, 1
      %p80 = por %p78, %p79
      %p82 = scmp.ne.s32.totalorder %s67, %s81
      %p83 = scmp.eq.s32.totalorder %s22, 0
      %p84 = por %p82, %p83
      %s85 = ssub.s32 %s23, %s35
      %p86 = scmp.eq.s32.totalorder %s85, 0
      %s88 = sadd.s32 %s87, 1
      %s89 = scalar_select %p86, %s87, %s88
      %p92 = pneg %p86
      %p93 = scmp.eq.s32.totalorder %s16, 1
      %p94 = por %p92, %p93
      %p95 = scmp.ne.s32.totalorder %s87, %s90
      %p96 = scmp.eq.s32.totalorder %s16, 0
      %p97 = por %p95, %p96
      %p98 = scmp.ne.s32.totalorder %s87, %s90
      %p99 = scmp.eq.s32.totalorder %s21, 1
      %p100 = por %p98, %p99
      %p101 = scmp.ne.s32.totalorder %s90, %s91
      %p102 = scmp.eq.s32.totalorder %s21, 0
      %p103 = por %p101, %p102
      %p104 = scmp.ne.s32.totalorder %s90, %s91
      %p105 = scmp.eq.s32.totalorder %s22, 1
      %p106 = por %p104, %p105
      %p108 = scmp.ne.s32.totalorder %s91, %s107
      %p109 = scmp.eq.s32.totalorder %s22, 0
      %p110 = por %p108, %p109
      %s111 = ssub.s32 %s23, %s35
      %p112 = scmp.eq.s32.totalorder %s111, 0
      %s114 = sadd.s32 %s113, 1
      %s115 = scalar_select %p112, %s113, %s114
      %p118 = pneg %p112
      %p119 = scmp.eq.s32.totalorder %s16, 1
      %p120 = por %p118, %p119
      %p121 = scmp.ne.s32.totalorder %s113, %s116
      %p122 = scmp.eq.s32.totalorder %s16, 0
      %p123 = por %p121, %p122
      %p124 = scmp.ne.s32.totalorder %s113, %s116
      %p125 = scmp.eq.s32.totalorder %s21, 1
      %p126 = por %p124, %p125
      %p127 = scmp.ne.s32.totalorder %s116, %s117
      %p128 = scmp.eq.s32.totalorder %s21, 0
      %p129 = por %p127, %p128
      %p130 = scmp.ne.s32.totalorder %s116, %s117
      %p131 = scmp.eq.s32.totalorder %s22, 1
      %p132 = por %p130, %p131
      %p134 = scmp.ne.s32.totalorder %s117, %s133
      %p135 = scmp.eq.s32.totalorder %s22, 0
      %p136 = por %p134, %p135
      %p137 = scmp.le.s32.totalorder 1, %s16
      %p138 = scmp.lt.s32.totalorder %s16, 3
      %p139 = pnand %p137, %p138
      %p140 = pneg %p139
      // Predicated region
      $region9: #{tpu_custom_call.1} parent=5 // pred_check
        _
      $region10: #{tpu_custom_call.1} parent=5 // pred_check_branch
        %142 = sbr.rel (%p139) target = $region12
      $region11: #{tpu_custom_call.1} parent=5 // pred_region
        %s143 = ssub.s32 %s16, 1
        // Predicated region
        $region13: #{tpu_custom_call.1} parent=11 // pred_check
          %p144 = pneg %p77
        $region14: #{tpu_custom_call.1} parent=11 // pred_check_branch
          %146 = sbr.rel (%p144) target = $region16
        $region15: #{tpu_custom_call.1} parent=11 // pred_region
          _
        $region16: #{tpu_custom_call.1} parent=11 // pred_fallthru
          _
      $region12: #{tpu_custom_call.1} parent=5 // pred_fallthru
        _
      %p147 = scmp.lt.s32.totalorder %s16, 2
      // Predicated region
      $region17: #{tpu_custom_call.1} parent=5 // pred_check
        %p148 = pneg %p147
      $region18: #{tpu_custom_call.1} parent=5 // pred_check_branch
        %150 = sbr.rel (%p148) target = $region20
      $region19: #{tpu_custom_call.1} parent=5 // pred_region
        // Predicated region
        $region21: #{tpu_custom_call.1} parent=19 // pred_check
          %p151 = pneg %p50
        $region22: #{tpu_custom_call.1} parent=19 // pred_check_branch
          %153 = sbr.rel (%p151) target = $region24
        $region23: #{tpu_custom_call.1} parent=19 // pred_region
          %s154 = smul.u32 32, %s24
          %p155 = scmp.lt.s32.totalorder %s23, 1
          %s156 = scalar_select %p155, %s23, 1
          %p157 = scmp.lt.s32.totalorder %s154, 31
          %s158 = scalar_select %p157, %s154, 31
          %s159 = smul.addr %s156, 32
          %s160 = sadd.s32 %s158, %s159
          %s161 = smul.addr %s160, 4
          %s162 = scalar_lea.vmem %s0, %s161
          %s163 = smul.u32 32, %s24
        $region24: #{tpu_custom_call.1} parent=19 // pred_fallthru
          _
      $region20: #{tpu_custom_call.1} parent=5 // pred_fallthru
        _
      %p164 = scmp.le.s32.totalorder 1, %s16
      %p165 = scmp.lt.s32.totalorder %s16, 3
      %p166 = pnand %p164, %p165
      %p167 = pneg %p166
      // Predicated region
      $region25: #{tpu_custom_call.1} parent=5 // pred_check
        _
      $region26: #{tpu_custom_call.1} parent=5 // pred_check_branch
        %169 = sbr.rel (%p166) target = $region28
      $region27: #{tpu_custom_call.1} parent=5 // pred_region
        %s170 = ssub.s32 %s16, 1
        %s171 = smul.u32 32, %s26
        %p172 = scmp.lt.s32.totalorder %s25, 1
        %s173 = scalar_select %p172, %s25, 1
        %p174 = scmp.lt.s32.totalorder %s171, 31
        %s175 = scalar_select %p174, %s171, 31
        %s176 = smul.addr %s173, 32
        %s177 = sadd.s32 %s175, %s176
        %s178 = smul.addr %s177, 4
        %s179 = scalar_lea.vmem %s0, %s178
        %p180 = pneg %p56
        %p181 = pneg %p53
        %p182 = pneg %p77
        %p183 = pneg %p74
        %p184 = pneg %p103
        %p185 = pneg %p100
        %s186 = sand.u32 %s90, 1
        %s187 = scalar_lea.sflag [#allocation3], %s186
        %s188 = sand.u32 %s90, 1
        %s189 = smul.addr %s188, 8
        %s190 = scalar_lea.vmem [#allocation2], %s189
        %p191 = pneg %p129
        %p192 = pneg %p126
        %s193 = sand.u32 %s116, 1
        %s194 = scalar_lea.sflag [#allocation5], %s193
        %s195 = sand.u32 %s116, 1
        %s196 = smul.addr %s195, 8
        %s197 = scalar_lea.vmem [#allocation4], %s196
        %s198 = smul.u32 32, %s26
        %p199 = scmp.lt.s32.totalorder %s25, 1
        %s200 = scalar_select %p199, %s25, 1
        %p201 = scmp.lt.s32.totalorder %s198, 31
        %s202 = scalar_select %p201, %s198, 31
        %s203 = smul.addr %s200, 32
        %s204 = sadd.s32 %s202, %s203
        %s205 = smul.addr %s204, 4
        %s206 = scalar_lea.vmem %s0, %s205
        %s207 = smul.u32 32, %s26
        %p209 = scmp.eq.s32.totalorder %s26, 0
        // Predicated region
        $region29: #{tpu_custom_call.1} parent=27 // pred_check
          %p210 = pneg %p209
        $region30: #{tpu_custom_call.1} parent=27 // pred_check_branch
          %212 = sbr.rel (%p210) target = $region32
        $region31: #{tpu_custom_call.1} parent=27 // pred_region
          %213 = vst [vmem:[%s190] sm:$0xff] 0.0
          %214 = vst [vmem:[%s197] sm:$0xff] 0.0
        $region32: #{tpu_custom_call.1} parent=27 // pred_fallthru
          _
        %v215 = vld [vmem:[%s206] sm:$0xf]
        %v216 = vld [vmem:[%s206 + $0x4] sm:$0xf]
        %v217 = vld [vmem:[%s206 + $0x8] sm:$0xf]
        %v218 = vld [vmem:[%s206 + $0xc] sm:$0xf]
        %v219 = vld [vmem:[%s206 + $0x10] sm:$0xf]
        %v220 = vld [vmem:[%s206 + $0x14] sm:$0xf]
        %v221 = vld [vmem:[%s206 + $0x18] sm:$0xf]
        %v222 = vld [vmem:[%s206 + $0x1c] sm:$0xf]
        %v223 = vld [vmem:[%s206 + $0x20] sm:$0xf]
        %v224 = vld [vmem:[%s206 + $0x24] sm:$0xf]
        %v225 = vld [vmem:[%s206 + $0x28] sm:$0xf]
        %v226 = vld [vmem:[%s206 + $0x2c] sm:$0xf]
        %v227 = vld [vmem:[%s206 + $0x30] sm:$0xf]
        %v228 = vld [vmem:[%s206 + $0x34] sm:$0xf]
        %v229 = vld [vmem:[%s206 + $0x38] sm:$0xf]
        %v230 = vld [vmem:[%s206 + $0x3c] sm:$0xf]
        %v231 = vld [vmem:[%s206 + $0x40] sm:$0xf]
        %v232 = vld [vmem:[%s206 + $0x44] sm:$0xf]
        %v233 = vld [vmem:[%s206 + $0x48] sm:$0xf]
        %v234 = vld [vmem:[%s206 + $0x4c] sm:$0xf]
        %v235 = vld [vmem:[%s206 + $0x50] sm:$0xf]
        %v236 = vld [vmem:[%s206 + $0x54] sm:$0xf]
        %v237 = vld [vmem:[%s206 + $0x58] sm:$0xf]
        %v238 = vld [vmem:[%s206 + $0x5c] sm:$0xf]
        %v239 = vld [vmem:[%s206 + $0x60] sm:$0xf]
        %v240 = vld [vmem:[%s206 + $0x64] sm:$0xf]
        %v241 = vld [vmem:[%s206 + $0x68] sm:$0xf]
        %v242 = vld [vmem:[%s206 + $0x6c] sm:$0xf]
        %v243 = vld [vmem:[%s206 + $0x70] sm:$0xf]
        %v244 = vld [vmem:[%s206 + $0x74] sm:$0xf]
        %v245 = vld [vmem:[%s206 + $0x78] sm:$0xf]
        %v246 = vld [vmem:[%s206 + $0x7c] sm:$0xf]
        %v247 = vld [vmem:[%s1] sm:$0xf]
        %v248 = vld [vmem:[%s1 + $0x4] sm:$0xf]
        %v249 = vld [vmem:[%s1 + $0x8] sm:$0xf]
        %v250 = vld [vmem:[%s1 + $0xc] sm:$0xf]
        %v251 = vld [vmem:[%s1 + $0x10] sm:$0x3]
        %v284 = vunpack.c.l.b16 %v215
        %v285 = vunpack.c.l.b16 %v216
        %v286 = vunpack.c.l.b16 %v217
        %v287 = vunpack.c.l.b16 %v218
        %v288 = vunpack.c.l.b16 %v219
        %v289 = vunpack.c.l.b16 %v220
        %v290 = vunpack.c.l.b16 %v221
        %v291 = vunpack.c.l.b16 %v222
        %v292 = vunpack.c.l.b16 %v223
        %v293 = vunpack.c.l.b16 %v224
        %v294 = vunpack.c.l.b16 %v225
        %v295 = vunpack.c.l.b16 %v226
        %v296 = vunpack.c.l.b16 %v227
        %v297 = vunpack.c.l.b16 %v228
        %v298 = vunpack.c.l.b16 %v229
        %v299 = vunpack.c.l.b16 %v230
        %v300 = vunpack.c.l.b16 %v231
        %v301 = vunpack.c.l.b16 %v232
        %v302 = vunpack.c.l.b16 %v233
        %v303 = vunpack.c.l.b16 %v234
        %v304 = vunpack.c.l.b16 %v235
        %v305 = vunpack.c.l.b16 %v236
        %v306 = vunpack.c.l.b16 %v237
        %v307 = vunpack.c.l.b16 %v238
        %v308 = vunpack.c.l.b16 %v239
        %v309 = vunpack.c.l.b16 %v240
        %v310 = vunpack.c.l.b16 %v241
        %v311 = vunpack.c.l.b16 %v242
        %v312 = vunpack.c.l.b16 %v243
        %v313 = vunpack.c.l.b16 %v244
        %v314 = vunpack.c.l.b16 %v245
        %v315 = vunpack.c.l.b16 %v246
        %v316 = vpack.c.b16 %v285, %v284
        %v317 = vpack.c.b16 %v287, %v286
        %v318 = vpack.c.b16 %v289, %v288
        %v319 = vpack.c.b16 %v291, %v290
        %v320 = vpack.c.b16 %v293, %v292
        %v321 = vpack.c.b16 %v295, %v294
        %v322 = vpack.c.b16 %v297, %v296
        %v323 = vpack.c.b16 %v299, %v298
        %v324 = vpack.c.b16 %v301, %v300
        %v325 = vpack.c.b16 %v303, %v302
        %v326 = vpack.c.b16 %v305, %v304
        %v327 = vpack.c.b16 %v307, %v306
        %v328 = vpack.c.b16 %v309, %v308
        %v329 = vpack.c.b16 %v311, %v310
        %v330 = vpack.c.b16 %v313, %v312
        %v331 = vpack.c.b16 %v315, %v314
        %v337 = vunpack.c.l.b16 %v247
        %v338 = vunpack.c.l.b16 %v248
        %v339 = vunpack.c.l.b16 %v249
        %v340 = vunpack.c.l.b16 %v250
        %v341 = vunpack.c.l.b16 %v251
        %v342 = vpack.c.b16 %v338, %v337
        %v343 = vpack.c.b16 %v340, %v339
        %v344 = vpack.c.b16 %v341, %v341
        %vm347 = vcmask 293888
        %v349 = vsel %vm347, %v316, 0
        %v352 = vsel %vm347, %v317, 0
        %v355 = vsel %vm347, %v318, 0
        %v358 = vsel %vm347, %v319, 0
        %v361 = vsel %vm347, %v320, 0
        %v364 = vsel %vm347, %v321, 0
        %v367 = vsel %vm347, %v322, 0
        %v370 = vsel %vm347, %v323, 0
        %v373 = vsel %vm347, %v324, 0
        %v376 = vsel %vm347, %v325, 0
        %v379 = vsel %vm347, %v326, 0
        %v382 = vsel %vm347, %v327, 0
        %v385 = vsel %vm347, %v328, 0
        %v388 = vsel %vm347, %v329, 0
        %v391 = vsel %vm347, %v330, 0
        %v394 = vsel %vm347, %v331, 0
        %vm396 = vcmask 1041408
        %v398 = vsel %vm396, %v344, 0
        %400 = vmatprep.subr.bf16.mxu0 0
        %401 = vmatpush1.bf16.msra.mxu0 %v342
        %402 = vmatprep.subr.bf16.mxu0 0
        %403 = vmatpush1.bf16.msra.mxu0 %v343
        %404 = vmatprep.subr.bf16.mxu0 0
        %405 = vmatpush1.bf16.msra.mxu0 %v398
        %406 = vmatprep.subr.bf16.mxu0 0
        %407 = vmatpush1.bf16.msra.mxu0 0
        %408 = vmatprep.subr.bf16.mxu0 0
        %409 = vmatpush1.bf16.msra.mxu0 0
        %410 = vmatprep.subr.bf16.mxu0 0
        %411 = vmatpush1.bf16.msra.mxu0 0
        %412 = vmatprep.subr.bf16.mxu0 0
        %413 = vmatpush1.bf16.msra.mxu0 0
        %414 = vmatprep.subr.bf16.mxu0 0
        %415 = vmatpush1.bf16.msra.mxu0 0
        %416 = vmatprep.subr.bf16.mxu0 0
        %417 = vmatpush1.bf16.msra.mxu0 0
        %418 = vmatprep.subr.bf16.mxu0 0
        %419 = vmatpush1.bf16.msra.mxu0 0
        %420 = vmatprep.subr.bf16.mxu0 0
        %421 = vmatpush1.bf16.msra.mxu0 0
        %422 = vmatprep.subr.bf16.mxu0 0
        %423 = vmatpush1.bf16.msra.mxu0 0
        %424 = vmatprep.subr.bf16.mxu0 0
        %425 = vmatpush1.bf16.msra.mxu0 0
        %426 = vmatprep.subr.bf16.mxu0 0
        %427 = vmatpush1.bf16.msra.mxu0 0
        %428 = vmatprep.subr.bf16.mxu0 0
        %429 = vmatpush1.bf16.msra.mxu0 0
        %430 = vmatprep.subr.bf16.mxu0 0
        %431 = vmatpush1.bf16.msra.mxu0 0
        %432 = vmatprep.mubr.bf16.mxu0 0
        %433 = vmatmul.mubr.bf16.gmra.mrb[0].mxu0 %v349
        %v434 = vpop.f32.mrb[0].mxu0
        %v435 = vadd.f32 0.0, %v434
        %v436 = vpop.f32.mrb[0].mxu0
        %v437 = vpop.f32.mrb[0].mxu0
        %v438 = vadd.f32 0.0, %v437
        %v439 = vpop.f32.mrb[0].mxu0
        %440 = vmatprep.mubr.bf16.mxu0 0
        %441 = vmatmul.mubr.bf16.gmra.mrb[0].mxu0 %v352
        %v442 = vpop.f32.mrb[0].mxu0
        %v443 = vadd.f32 0.0, %v442
        %v444 = vpop.f32.mrb[0].mxu0
        %v445 = vpop.f32.mrb[0].mxu0
        %v446 = vadd.f32 0.0, %v445
        %v447 = vpop.f32.mrb[0].mxu0
        %448 = vmatprep.mubr.bf16.mxu0 0
        %449 = vmatmul.mubr.bf16.gmra.mrb[0].mxu0 %v355
        %v450 = vpop.f32.mrb[0].mxu0
        %v451 = vadd.f32 0.0, %v450
        %v452 = vpop.f32.mrb[0].mxu0
        %v453 = vpop.f32.mrb[0].mxu0
        %v454 = vadd.f32 0.0, %v453
        %v455 = vpop.f32.mrb[0].mxu0
        %456 = vmatprep.mubr.bf16.mxu0 0
        %457 = vmatmul.mubr.bf16.gmra.mrb[0].mxu0 %v358
        %v458 = vpop.f32.mrb[0].mxu0
        %v459 = vadd.f32 0.0, %v458
        %v460 = vpop.f32.mrb[0].mxu0
        %v461 = vpop.f32.mrb[0].mxu0
        %v462 = vadd.f32 0.0, %v461
        %v463 = vpop.f32.mrb[0].mxu0
        %464 = vmatprep.mubr.bf16.mxu0 0
        %465 = vmatmul.mubr.bf16.gmra.mrb[0].mxu0 %v361
        %v466 = vpop.f32.mrb[0].mxu0
        %v467 = vadd.f32 0.0, %v466
        %v468 = vpop.f32.mrb[0].mxu0
        %v469 = vpop.f32.mrb[0].mxu0
        %v470 = vadd.f32 0.0, %v469
        %v471 = vpop.f32.mrb[0].mxu0
        %472 = vmatprep.mubr.bf16.mxu0 0
        %473 = vmatmul.mubr.bf16.gmra.mrb[0].mxu0 %v364
        %v474 = vpop.f32.mrb[0].mxu0
        %v475 = vadd.f32 0.0, %v474
        %v476 = vpop.f32.mrb[0].mxu0
        %v477 = vpop.f32.mrb[0].mxu0
        %v478 = vadd.f32 0.0, %v477
        %v479 = vpop.f32.mrb[0].mxu0
        %480 = vmatprep.mubr.bf16.mxu0 0
        %481 = vmatmul.mubr.bf16.gmra.mrb[0].mxu0 %v367
        %v482 = vpop.f32.mrb[0].mxu0
        %v483 = vadd.f32 0.0, %v482
        %v484 = vpop.f32.mrb[0].mxu0
        %v485 = vpop.f32.mrb[0].mxu0
        %v486 = vadd.f32 0.0, %v485
        %v487 = vpop.f32.mrb[0].mxu0
        %488 = vmatprep.mubr.bf16.mxu0 0
        %489 = vmatmul.mubr.bf16.gmra.mrb[0].mxu0 %v370
        %v490 = vpop.f32.mrb[0].mxu0
        %v491 = vadd.f32 0.0, %v490
        %v492 = vpop.f32.mrb[0].mxu0
        %v493 = vpop.f32.mrb[0].mxu0
        %v494 = vadd.f32 0.0, %v493
        %v495 = vpop.f32.mrb[0].mxu0
        %496 = vmatprep.mubr.bf16.mxu0 0
        %497 = vmatmul.mubr.bf16.gmra.mrb[0].mxu0 %v373
        %v498 = vpop.f32.mrb[0].mxu0
        %v499 = vadd.f32 0.0, %v498
        %v500 = vpop.f32.mrb[0].mxu0
        %v501 = vpop.f32.mrb[0].mxu0
        %v502 = vadd.f32 0.0, %v501
        %v503 = vpop.f32.mrb[0].mxu0
        %504 = vmatprep.mubr.bf16.mxu0 0
        %505 = vmatmul.mubr.bf16.gmra.mrb[0].mxu0 %v376
        %v506 = vpop.f32.mrb[0].mxu0
        %v507 = vadd.f32 0.0, %v506
        %v508 = vpop.f32.mrb[0].mxu0
        %v509 = vpop.f32.mrb[0].mxu0
        %v510 = vadd.f32 0.0, %v509
        %v511 = vpop.f32.mrb[0].mxu0
        %512 = vmatprep.mubr.bf16.mxu0 0
        %513 = vmatmul.mubr.bf16.gmra.mrb[0].mxu0 %v379
        %v514 = vpop.f32.mrb[0].mxu0
        %v515 = vadd.f32 0.0, %v514
        %v516 = vpop.f32.mrb[0].mxu0
        %v517 = vpop.f32.mrb[0].mxu0
        %v518 = vadd.f32 0.0, %v517
        %v519 = vpop.f32.mrb[0].mxu0
        %520 = vmatprep.mubr.bf16.mxu0 0
        %521 = vmatmul.mubr.bf16.gmra.mrb[0].mxu0 %v382
        %v522 = vpop.f32.mrb[0].mxu0
        %v523 = vadd.f32 0.0, %v522
        %v524 = vpop.f32.mrb[0].mxu0
        %v525 = vpop.f32.mrb[0].mxu0
        %v526 = vadd.f32 0.0, %v525
        %v527 = vpop.f32.mrb[0].mxu0
        %528 = vmatprep.mubr.bf16.mxu0 0
        %529 = vmatmul.mubr.bf16.gmra.mrb[0].mxu0 %v385
        %v530 = vpop.f32.mrb[0].mxu0
        %v531 = vadd.f32 0.0, %v530
        %v532 = vpop.f32.mrb[0].mxu0
        %v533 = vpop.f32.mrb[0].mxu0
        %v534 = vadd.f32 0.0, %v533
        %v535 = vpop.f32.mrb[0].mxu0
        %536 = vmatprep.mubr.bf16.mxu0 0
        %537 = vmatmul.mubr.bf16.gmra.mrb[0].mxu0 %v388
        %v538 = vpop.f32.mrb[0].mxu0
        %v539 = vadd.f32 0.0, %v538
        %v540 = vpop.f32.mrb[0].mxu0
        %v541 = vpop.f32.mrb[0].mxu0
        %v542 = vadd.f32 0.0, %v541
        %v543 = vpop.f32.mrb[0].mxu0
        %544 = vmatprep.mubr.bf16.mxu0 0
        %545 = vmatmul.mubr.bf16.gmra.mrb[0].mxu0 %v391
        %v546 = vpop.f32.mrb[0].mxu0
        %v547 = vadd.f32 0.0, %v546
        %v548 = vpop.f32.mrb[0].mxu0
        %v549 = vpop.f32.mrb[0].mxu0
        %v550 = vadd.f32 0.0, %v549
        %v551 = vpop.f32.mrb[0].mxu0
        %552 = vmatprep.mubr.bf16.mxu0 0
        %553 = vmatmul.mubr.bf16.gmra.mrb[0].mxu0 %v394
        %v554 = vpop.f32.mrb[0].mxu0
        %v555 = vadd.f32 0.0, %v554
        %v556 = vpop.f32.mrb[0].mxu0
        %v557 = vpop.f32.mrb[0].mxu0
        %v558 = vadd.f32 0.0, %v557
        %v559 = vpop.f32.mrb[0].mxu0
        %560 = vdwg.mxu0
        %v561 = vld [vmem:[%s190] sm:$0xff]
        %v562 = vadd.f32 %v435, %v438
        %v563 = vadd.f32 %v562, %v443
        %v564 = vadd.f32 %v563, %v446
        %v565 = vadd.f32 %v564, %v451
        %v566 = vadd.f32 %v565, %v454
        %v567 = vadd.f32 %v566, %v459
        %v568 = vadd.f32 %v567, %v462
        %v569 = vadd.f32 %v568, %v467
        %v570 = vadd.f32 %v569, %v470
        %v571 = vadd.f32 %v570, %v475
        %v572 = vadd.f32 %v571, %v478
        %v573 = vadd.f32 %v572, %v483
        %v574 = vadd.f32 %v573, %v486
        %v575 = vadd.f32 %v574, %v491
        %v576 = vadd.f32 %v575, %v494
        %v577 = vadd.f32 %v576, %v499
        %v578 = vadd.f32 %v577, %v502
        %v579 = vadd.f32 %v578, %v507
        %v580 = vadd.f32 %v579, %v510
        %v581 = vadd.f32 %v580, %v515
        %v582 = vadd.f32 %v581, %v518
        %v583 = vadd.f32 %v582, %v523
        %v584 = vadd.f32 %v583, %v526
        %v585 = vadd.f32 %v584, %v531
        %v586 = vadd.f32 %v585, %v534
        %v587 = vadd.f32 %v586, %v539
        %v588 = vadd.f32 %v587, %v542
        %v589 = vadd.f32 %v588, %v547
        %v590 = vadd.f32 %v589, %v550
        %v591 = vadd.f32 %v590, %v555
        %v592 = vadd.f32 %v591, %v558
        %v593 = vadd.f32 %v561, %v592
        %594 = vst [vmem:[%s190] sm:$0xff] %v593
        %v595 = vld [vmem:[%s197] sm:$0xff]
        %v596 = vmul.f32 %v435, %v435
        %v597 = vmul.f32 %v438, %v438
        %v598 = vmul.f32 %v443, %v443
        %v599 = vmul.f32 %v446, %v446
        %v600 = vmul.f32 %v451, %v451
        %v601 = vmul.f32 %v454, %v454
        %v602 = vmul.f32 %v459, %v459
        %v603 = vmul.f32 %v462, %v462
        %v604 = vmul.f32 %v467, %v467
        %v605 = vmul.f32 %v470, %v470
        %v606 = vmul.f32 %v475, %v475
        %v607 = vmul.f32 %v478, %v478
        %v608 = vmul.f32 %v483, %v483
        %v609 = vmul.f32 %v486, %v486
        %v610 = vmul.f32 %v491, %v491
        %v611 = vmul.f32 %v494, %v494
        %v612 = vmul.f32 %v499, %v499
        %v613 = vmul.f32 %v502, %v502
        %v614 = vmul.f32 %v507, %v507
        %v615 = vmul.f32 %v510, %v510
        %v616 = vmul.f32 %v515, %v515
        %v617 = vmul.f32 %v518, %v518
        %v618 = vmul.f32 %v523, %v523
        %v619 = vmul.f32 %v526, %v526
        %v620 = vmul.f32 %v531, %v531
        %v621 = vmul.f32 %v534, %v534
        %v622 = vmul.f32 %v539, %v539
        %v623 = vmul.f32 %v542, %v542
        %v624 = vmul.f32 %v547, %v547
        %v625 = vmul.f32 %v550, %v550
        %v626 = vmul.f32 %v555, %v555
        %v627 = vmul.f32 %v558, %v558
        %v628 = vadd.f32 %v596, %v597
        %v629 = vadd.f32 %v628, %v598
        %v630 = vadd.f32 %v629, %v599
        %v631 = vadd.f32 %v630, %v600
        %v632 = vadd.f32 %v631, %v601
        %v633 = vadd.f32 %v632, %v602
        %v634 = vadd.f32 %v633, %v603
        %v635 = vadd.f32 %v634, %v604
        %v636 = vadd.f32 %v635, %v605
        %v637 = vadd.f32 %v636, %v606
        %v638 = vadd.f32 %v637, %v607
        %v639 = vadd.f32 %v638, %v608
        %v640 = vadd.f32 %v639, %v609
        %v641 = vadd.f32 %v640, %v610
        %v642 = vadd.f32 %v641, %v611
        %v643 = vadd.f32 %v642, %v612
        %v644 = vadd.f32 %v643, %v613
        %v645 = vadd.f32 %v644, %v614
        %v646 = vadd.f32 %v645, %v615
        %v647 = vadd.f32 %v646, %v616
        %v648 = vadd.f32 %v647, %v617
        %v649 = vadd.f32 %v648, %v618
        %v650 = vadd.f32 %v649, %v619
        %v651 = vadd.f32 %v650, %v620
        %v652 = vadd.f32 %v651, %v621
        %v653 = vadd.f32 %v652, %v622
        %v654 = vadd.f32 %v653, %v623
        %v655 = vadd.f32 %v654, %v624
        %v656 = vadd.f32 %v655, %v625
        %v657 = vadd.f32 %v656, %v626
        %v658 = vadd.f32 %v657, %v627
        %v659 = vadd.f32 %v595, %v658
        %660 = vst [vmem:[%s197] sm:$0xff] %v659
        %s661 = sand.u32 %s90, 1
        %s662 = scalar_lea.sflag [#allocation3], %s661
        %s663 = sand.u32 %s90, 1
        %s664 = smul.addr %s663, 8
        %s665 = scalar_lea.vmem [#allocation2], %s664
        %s666 = sand.u32 %s116, 1
        %s667 = scalar_lea.sflag [#allocation5], %s666
        %s668 = sand.u32 %s116, 1
        %s669 = smul.addr %s668, 8
        %s670 = scalar_lea.vmem [#allocation4], %s669
        // Predicated region
        $region33: #{tpu_custom_call.1} parent=27 // pred_check
          %p671 = pneg %p100
        $region34: #{tpu_custom_call.1} parent=27 // pred_check_branch
          %673 = sbr.rel (%p671) target = $region36
        $region35: #{tpu_custom_call.1} parent=27 // pred_region
          %s675 = ssub.s32 128, 128
          %676 = vsyncadd %s662, %s675
          %s677 = smul.addr %s25, 128
          %s678 = scalar_lea.hbm %s2, %s677
          %s680 = sshll.u32 %s665, 4
          %s681 = int_to_ptr.vmem [resolvable:$true] %s680
          %683 = dma.vmem_to_hbm [thread:$0]  %s681, 128, %s678, %s662
        $region36: #{tpu_custom_call.1} parent=27 // pred_fallthru
          _
        // Predicated region
        $region37: #{tpu_custom_call.1} parent=27 // pred_check
          %p684 = pneg %p126
        $region38: #{tpu_custom_call.1} parent=27 // pred_check_branch
          %686 = sbr.rel (%p684) target = $region40
        $region39: #{tpu_custom_call.1} parent=27 // pred_region
          %s688 = ssub.s32 128, 128
          %689 = vsyncadd %s667, %s688
          %s690 = smul.addr %s25, 128
          %s691 = scalar_lea.hbm %s3, %s690
          %s693 = sshll.u32 %s670, 4
          %s694 = int_to_ptr.vmem [resolvable:$true] %s693
          %696 = dma.vmem_to_hbm [thread:$0]  %s694, 128, %s691, %s667
        $region40: #{tpu_custom_call.1} parent=27 // pred_fallthru
          _
      $region28: #{tpu_custom_call.1} parent=5 // pred_fallthru
        _
      %p697 = scmp.le.s32.totalorder 2, %s16
      // Predicated region
      $region41: #{tpu_custom_call.1} parent=5 // pred_check
        %p698 = pneg %p697
      $region42: #{tpu_custom_call.1} parent=5 // pred_check_branch
        %700 = sbr.rel (%p698) target = $region44
      $region43: #{tpu_custom_call.1} parent=5 // pred_region
        %s701 = ssub.s32 %s16, 2
        // Predicated region
        $region45: #{tpu_custom_call.1} parent=43 // pred_check
          %p702 = pneg %p106
        $region46: #{tpu_custom_call.1} parent=43 // pred_check_branch
          %704 = sbr.rel (%p702) target = $region48
        $region47: #{tpu_custom_call.1} parent=43 // pred_region
          %s705 = sand.u32 %s91, 1
          %s706 = scalar_lea.sflag [#allocation3], %s705
          %s707 = sand.u32 %s91, 1
          %s708 = smul.addr %s707, 8
          %s709 = scalar_lea.vmem [#allocation2], %s708
          %710 = dma.done %s706, 128
        $region48: #{tpu_custom_call.1} parent=43 // pred_fallthru
          _
        // Predicated region
        $region49: #{tpu_custom_call.1} parent=43 // pred_check
          %p711 = pneg %p132
        $region50: #{tpu_custom_call.1} parent=43 // pred_check_branch
          %713 = sbr.rel (%p711) target = $region52
        $region51: #{tpu_custom_call.1} parent=43 // pred_region
          %s714 = sand.u32 %s117, 1
          %s715 = scalar_lea.sflag [#allocation5], %s714
          %s716 = sand.u32 %s117, 1
          %s717 = smul.addr %s716, 8
          %s718 = scalar_lea.vmem [#allocation4], %s717
          %719 = dma.done %s715, 128
        $region52: #{tpu_custom_call.1} parent=43 // pred_fallthru
          _
      $region44: #{tpu_custom_call.1} parent=5 // pred_fallthru
        _
    $region6: #{tpu_custom_call.1} parent=1 // loop_footer
      %s20 = sadd.s32 1, %s16
    $region7: #{tpu_custom_call.1} parent=1 // loop_footer_branch
      %15 = sbr.rel target = $region3
    $region8: #{tpu_custom_call.1} parent=1 // loop_exit
      _
    %720 = vsyncpa [#allocation3], 1
    %s721 = scalar_lea.sflag [#allocation3], 1
    %722 = vsyncpa %s721, 1
    %723 = vsyncpa [#allocation5], 1
    %s724 = scalar_lea.sflag [#allocation5], 1
    %725 = vsyncpa %s724, 1

</llo_original>
